<compile_context>
chip_gen: v7x
topology: tpu7x:2x2x1
jax: 0.10.0
libtpu: 0.0.40
codegen_flags: <defaults>
</compile_context>

<pallas_src>
import functools
import math

import jax
import jax.numpy as jnp
from jax.experimental import pallas as pl
from jax.experimental.pallas import tpu as pltpu


def _rmsnorm_kernel(x_ref, w_ref, o_ref, *, eps, inv_dim):
    # x_ref: (block_rows, dim)  w_ref: (1, dim)  o_ref: (block_rows, dim)
    x_f32 = x_ref[...].astype(jnp.float32)
    # mean-of-squares as sum * (1/dim); inv_dim uses the true dim.
    ms = jnp.sum(x_f32 * x_f32, axis=-1, keepdims=True) * inv_dim
    inv_rms = jax.lax.rsqrt(ms + eps)  # EUP slot
    w_f32 = w_ref[...].astype(jnp.float32)
    # Folded f32 epilogue, single cast at the store (saves a block-sized temp).
    o_ref[...] = (x_f32 * inv_rms * w_f32).astype(o_ref.dtype)


def _round_up(n, m):
    return ((n + m - 1) // m) * m


def _sublane_pack(dtype):
    # f32 -> 8, bf16/f16 -> 16, int8/fp8 -> 32 rows per packed sublane group.
    return max(8, 32 // jnp.dtype(dtype).itemsize)


def _vmem_limit_bytes():
    """Per-generation scoped-VMEM limit: ~60% of physical VMEM, clipped to
    [32 MiB, 48 MiB].  -> 48 MiB on 128 MiB parts (v5e/v6e), ~38 MiB on the
    64 MiB v7x part, always leaving compiler-scratch headroom."""
    try:
        cap = pltpu.get_tpu_info().vmem_capacity_bytes
    except Exception:
        cap = 64 * 1024 * 1024  # conservative fallback (v7x-sized)
    return int(min(48 * 1024 * 1024, max(32 * 1024 * 1024, int(cap * 0.6))))


def _choose_block_rows(rows, dim, x_dtype, out_dtype, vmem_limit_bytes):
    """Largest sublane-aligned row tile whose real per-step footprint
    (double-buffered in/out tiles + ~8 B/elem f32 temporaries) fits the
    VMEM budget, with enough grid steps to feed both TensorCores on v7x."""
    pack = max(_sublane_pack(x_dtype), _sublane_pack(out_dtype))
    in_b = jnp.dtype(x_dtype).itemsize
    out_b = jnp.dtype(out_dtype).itemsize
    bytes_per_row = dim * (2 * in_b + 2 * out_b + 8)
    budget = int(vmem_limit_bytes * 0.7)
    block = max(pack, (budget // bytes_per_row) // pack * pack)
    block = min(block, 2048)
    # Keep >= ~4 grid steps when the problem allows it (v7x megacore balance,
    # double-buffer overlap).  Pure perf knob; correctness never depends on it.
    quarter = (((rows + 3) // 4) // pack) * pack
    if quarter >= pack:
        block = min(block, quarter)
    # Never bigger than the (pack-rounded) problem itself.
    block = min(block, _round_up(rows, pack))
    return max(pack, block)


def rmsnorm(x, weight, eps=1e-5, block_rows=None):
    """RMSNorm over the last axis of x; weight has shape (dim,).

    eps defaults to 1e-5 to match the reference PyTorch module.  Output dtype
    is weight.dtype, matching `weight * x.to(weight.dtype)`.
    """
    orig_shape = x.shape
    dim = orig_shape[-1]
    out_dtype = weight.dtype
    rows = math.prod(orig_shape[:-1]) if len(orig_shape) > 1 else 1

    x2d = x.reshape(rows, dim)
    w2d = weight.reshape(1, dim)

    vmem_limit = _vmem_limit_bytes()
    if block_rows is None:
        block_rows = _choose_block_rows(rows, dim, x.dtype, out_dtype, vmem_limit)
    else:
        pack = max(_sublane_pack(x.dtype), _sublane_pack(out_dtype))
        block_rows = max(pack, _round_up(block_rows, pack))

    # Ragged last block: no wrapper-side padding or slicing (rows are
    # independent; partial-block garbage rows are computed but not written).
    grid = (pl.cdiv(rows, block_rows),)

    in_b = jnp.dtype(x.dtype).itemsize
    out_b = jnp.dtype(out_dtype).itemsize
    cost = pl.CostEstimate(
        flops=4 * rows * dim,
        transcendentals=rows,
        bytes_accessed=rows * dim * (in_b + out_b)
        + dim * jnp.dtype(weight.dtype).itemsize,
    )

    kernel = functools.partial(_rmsnorm_kernel, eps=eps, inv_dim=1.0 / dim)

    out = pl.pallas_call(
        kernel,
        out_shape=jax.ShapeDtypeStruct((rows, dim), out_dtype),
        grid_spec=pltpu.PrefetchScalarGridSpec(
            num_scalar_prefetch=0,
            grid=grid,
            in_specs=[
                # Last block dim equals the full array dim -> valid for any dim,
                # lane-dense whenever dim % 128 == 0.
                pl.BlockSpec((block_rows, dim), lambda i: (i, 0)),
                # Constant index_map -> weight DMA is not re-issued per step.
                pl.BlockSpec((1, dim), lambda i: (0, 0)),
            ],
            out_specs=pl.BlockSpec((block_rows, dim), lambda i: (i, 0)),
        ),
        compiler_params=pltpu.CompilerParams(
            dimension_semantics=("parallel",),
            vmem_limit_bytes=vmem_limit,
        ),
        cost_estimate=cost,
    )(x2d, w2d)

    return out.reshape(orig_shape)


def rmsnorm_ref(x, weight, eps=1e-5):
    variance = jnp.mean(x.astype(jnp.float32) ** 2, axis=-1, keepdims=True)
    xn = x.astype(jnp.float32) * jax.lax.rsqrt(variance + eps)
    return weight * xn.astype(weight.dtype)


if __name__ == "__main__":
    key = jax.random.PRNGKey(0)

    # Main case: batch=2, seq=8, dim=128, f32 (matches the PyTorch module with
    # nn.Parameter(torch.ones(dim))).
    batch, seq, dim = 2, 8, 128
    x = jax.random.normal(key, (batch, seq, dim), dtype=jnp.float32)
    weight = jnp.ones((dim,), dtype=jnp.float32)

    out = jax.block_until_ready(rmsnorm(x, weight, eps=1e-5))
    ref = rmsnorm_ref(x, weight, eps=1e-5)
    assert out.shape == x.shape
    assert out.dtype == weight.dtype
    assert jnp.allclose(out, ref, atol=1e-5, rtol=1e-5), "mismatch vs reference"

    # Ragged-rows path (rows % block_rows != 0) — no wrapper padding anymore.
    x2 = jax.random.normal(jax.random.PRNGKey(1), (3, 37, dim), dtype=jnp.float32)
    out2 = jax.block_until_ready(rmsnorm(x2, weight, eps=1e-5))
    ref2 = rmsnorm_ref(x2, weight, eps=1e-5)
    assert jnp.allclose(out2, ref2, atol=1e-5, rtol=1e-5), "mismatch (ragged rows)"

    # Non-128 normalized dim (block last dim == full array dim, no lane pad).
    dim3 = 96
    x3 = jax.random.normal(jax.random.PRNGKey(2), (2, 16, dim3), dtype=jnp.float32)
    w3 = jax.random.normal(jax.random.PRNGKey(3), (dim3,), dtype=jnp.float32)
    out3 = jax.block_until_ready(rmsnorm(x3, w3, eps=1e-5))
    ref3 = rmsnorm_ref(x3, w3, eps=1e-5)
    assert jnp.allclose(out3, ref3, atol=1e-5, rtol=1e-5), "mismatch (odd dim)"

    # bf16 path (folded f32 epilogue may differ from torch by 1 bf16 ulp).
    xb = jax.random.normal(jax.random.PRNGKey(4), (4, 9, dim), dtype=jnp.bfloat16)
    wb = jnp.ones((dim,), dtype=jnp.bfloat16)
    outb = jax.block_until_ready(rmsnorm(xb, wb, eps=1e-5))
    refb = rmsnorm_ref(xb, wb, eps=1e-5)
    assert outb.dtype == jnp.bfloat16
    assert jnp.allclose(
        outb.astype(jnp.float32), refb.astype(jnp.float32), atol=3e-2, rtol=3e-2
    ), "mismatch (bf16)"

    print("KERNEL_OK")
</pallas_src>

<mosaic_0001>
module attributes {stable_mosaic.version = 11 : i64} {
  func.func @_rmsnorm_kernel(%arg0: i32, %arg1: memref<16x128xf32, #tpu.memory_space<vmem>>, %arg2: memref<1x128xf32, #tpu.memory_space<vmem>>, %arg3: memref<16x128xf32, #tpu.memory_space<vmem>>) attributes {dimension_semantics = [#tpu.dimension_semantics<parallel>], iteration_bounds = array<i64: 1>, scalar_prefetch = 0 : i64, scratch_operands = 0 : i64, tpu.core_type = #tpu.core_type<tc>, window_params = [{transform_indices = @transform_0, window_bounds = array<i64: 16, 128>}, {pipeline_mode = #tpu.pipeline_mode<synchronous>, transform_indices = @transform_1, window_bounds = array<i64: 1, 128>}, {transform_indices = @transform_2, window_bounds = array<i64: 16, 128>}]} {
    %c0 = arith.constant 0 : index
    %c0_0 = arith.constant 0 : index
    %0 = vector.load %arg1[%c0, %c0_0] : memref<16x128xf32, #tpu.memory_space<vmem>>, vector<16x128xf32>
    %1 = arith.mulf %0, %0 : vector<16x128xf32>
    %cst = arith.constant dense<0.000000e+00> : vector<16xf32>
    %2 = vector.multi_reduction <add>, %1, %cst [1] : vector<16x128xf32> to vector<16xf32>
    %3 = vector.shape_cast %2 : vector<16xf32> to vector<16x1xf32>
    %cst_1 = arith.constant 7.812500e-03 : f32
    %4 = vector.broadcast %cst_1 : f32 to vector<16x1xf32>
    %5 = arith.mulf %3, %4 : vector<16x1xf32>
    %cst_2 = arith.constant 9.99999974E-6 : f32
    %6 = vector.broadcast %cst_2 : f32 to vector<16x1xf32>
    %7 = arith.addf %5, %6 : vector<16x1xf32>
    %8 = math.rsqrt %7 : vector<16x1xf32>
    %c0_3 = arith.constant 0 : index
    %c0_4 = arith.constant 0 : index
    %9 = vector.load %arg2[%c0_3, %c0_4] : memref<1x128xf32, #tpu.memory_space<vmem>>, vector<1x128xf32>
    %10 = vector.broadcast %8 : vector<16x1xf32> to vector<16x128xf32>
    %11 = arith.mulf %0, %10 : vector<16x128xf32>
    %12 = vector.broadcast %9 : vector<1x128xf32> to vector<16x128xf32>
    %13 = arith.mulf %11, %12 : vector<16x128xf32>
    %c0_5 = arith.constant 0 : index
    %c0_6 = arith.constant 0 : index
    %14 = vector.load %arg3[%c0_5, %c0_6] : memref<16x128xf32, #tpu.memory_space<vmem>>, vector<16x128xf32>
    tpu.vector_store %arg3[%c0_5, %c0_6], %13 {strides = array<i32>} : memref<16x128xf32, #tpu.memory_space<vmem>>, vector<16x128xf32>,
    return
  }
  func.func @transform_0(%arg0: i32) -> (i32, i32) {
    %c0_i32 = arith.constant 0 : i32
    %c0_i32_0 = arith.constant 0 : i32
    return %arg0, %c0_i32 : i32, i32
  }
  func.func @transform_1(%arg0: i32) -> (i32, i32) {
    %c0_i32 = arith.constant 0 : i32
    %c0_i32_0 = arith.constant 0 : i32
    %c0_i32_1 = arith.constant 0 : i32
    return %c0_i32, %c0_i32_0 : i32, i32
  }
  func.func @transform_2(%arg0: i32) -> (i32, i32) {
    %c0_i32 = arith.constant 0 : i32
    %c0_i32_0 = arith.constant 0 : i32
    return %arg0, %c0_i32 : i32, i32
  }
}

</mosaic_0001>

<llo_original>
// kernel: tpu_custom_call.1
$region0: #{tpu_custom_call.1}
  #allocation0 [shape = 'u32[]', space=smem, size = 0x4, offset = 0x4, fixed_abs, tag = 'smem constant byte address 0x4 - core index']
  #allocation1 [shape = 'u32[144,128]{1,0:T(1,128)}', space=vmem, size = 0x12000, scoped, tag = 'internal scratch']
  %s0 = inlined_call_operand.hbm [shape: f32[16,128], index: 0, kind: input, shape index: {}]
  %s1 = inlined_call_operand.vmem [shape: f32[1,128], index: 1, kind: input, shape index: {}]
  %s2 = inlined_call_operand.hbm [shape: f32[16,128], index: 2, kind: output, shape index: {}]
  %s3 = sld [smem:[#allocation0]]
  $region22: #{tpu_custom_call.1} parent=0
    _
  %s5 = ssub.s32 1, %s3
  %s6 = scalar_select 0, %s5, %s3
  $region1: #{tpu_custom_call.1} parent=0
    #allocation2 [shape = 'u8[8192]{0}', space=vmem, size = 0x2000, scoped, tag = 'input window, operand 0, single buffered']
    #allocation3 [shape = 's32[1]{0}', space=sflag, size = 0x4, scoped, tag = 'scoped memory for tpu_custom_call.1']
    #allocation4 [shape = 's32[1]{0}', space=sflag, size = 0x4, scoped, tag = 'scoped memory for tpu_custom_call.1']
    #allocation5 [shape = 'u8[8192]{0}', space=vmem, size = 0x2000, scoped, tag = 'output window, operand 0, single buffered']
    %7 = vsyncpa [#allocation3], 0
    %8 = vsyncpa [#allocation4], 0
    // Predicated region
    $region2: #{tpu_custom_call.1} parent=1 // pred_check
      _
    $region3: #{tpu_custom_call.1} parent=1 // pred_check_branch
      %10 = sbr.rel (0) target = $region5
    $region4: #{tpu_custom_call.1} parent=1 // pred_region
      %s12 = ssub.s32 256, 256
      %13 = vsyncadd [#allocation3], %s12
      %s14 = sshll.u32 [#allocation2], 4
      %s15 = int_to_ptr.vmem [resolvable:$true] %s14
      %20 = dma.hbm_to_vmem [thread:$0]  %s0, 256, %s15, [#allocation3], 128, 128, 8
    $region5: #{tpu_custom_call.1} parent=1 // pred_fallthru
      _
    // Predicated region
    $region6: #{tpu_custom_call.1} parent=1 // pred_check
      _
    $region7: #{tpu_custom_call.1} parent=1 // pred_check_branch
      %22 = sbr.rel (0) target = $region9
    $region8: #{tpu_custom_call.1} parent=1 // pred_region
      _
    $region9: #{tpu_custom_call.1} parent=1 // pred_fallthru
      _
    // Predicated region
    $region10: #{tpu_custom_call.1} parent=1 // pred_check
      _
    $region11: #{tpu_custom_call.1} parent=1 // pred_check_branch
      %24 = sbr.rel (0) target = $region13
    $region12: #{tpu_custom_call.1} parent=1 // pred_region
      %25 = dma.done [#allocation3], 256
    $region13: #{tpu_custom_call.1} parent=1 // pred_fallthru
      _
    %v26 = vld [vmem:[#allocation2] sm:$0xff]
    %v27 = vld [vmem:[#allocation2 + $0x8] sm:$0xff]
    %v28 = vmul.f32 %v26, %v26
    %v29 = vmul.f32 %v27, %v27
    %30 = vadd.xlane.f32.xlu0 %v28
    %v31 = vpop.xlane.xlu0 %30
    %32 = vadd.xlane.f32.xlu0 %v29
    %v33 = vpop.xlane.xlu0 %32
    %v34 = vmul.f32 %v31, 0.0078125
    %v35 = vmul.f32 %v33, 0.0078125
    %v36 = vadd.f32 %v34, 1e-05
    %v37 = vadd.f32 %v35, 1e-05
    %v38 = vrsqrt.pop %v36
    %v39 = vrsqrt.pop %v37
    %v40 = vld [vmem:[%s1] sm:$0x1]
    %v41 = vmul.f32 %v26, %v38
    %v42 = vmul.f32 %v27, %v39
    %v44 = vlaneseq
    %v45 = vshrl.u32 %v44, 7
    %v46 = vsub.s32 0, %v45
    %v47 = vrot.slane %v40, %v46
    %v49 = vmul.f32 %v41, %v47
    %v50 = vmul.f32 %v42, %v47
    %51 = vst [vmem:[#allocation5] sm:$0xff] %v49
    %52 = vst [vmem:[#allocation5 + $0x8] sm:$0xff] %v50
    // Predicated region
    $region14: #{tpu_custom_call.1} parent=1 // pred_check
      _
    $region15: #{tpu_custom_call.1} parent=1 // pred_check_branch
      %54 = sbr.rel (0) target = $region17
    $region16: #{tpu_custom_call.1} parent=1 // pred_region
      %s56 = ssub.s32 256, 256
      %57 = vsyncadd [#allocation4], %s56
      %s58 = sshll.u32 [#allocation5], 4
      %s59 = int_to_ptr.vmem [resolvable:$true] %s58
      %64 = dma.vmem_to_hbm [thread:$0]  %s59, 256, %s2, [#allocation4], 128, 128, 8
    $region17: #{tpu_custom_call.1} parent=1 // pred_fallthru
      _
    // Predicated region
    $region18: #{tpu_custom_call.1} parent=1 // pred_check
      _
    $region19: #{tpu_custom_call.1} parent=1 // pred_check_branch
      %66 = sbr.rel (0) target = $region21
    $region20: #{tpu_custom_call.1} parent=1 // pred_region
      %67 = dma.done [#allocation4], 256
    $region21: #{tpu_custom_call.1} parent=1 // pred_fallthru
      _
    %68 = vsyncpa [#allocation3], 1
    %69 = vsyncpa [#allocation4], 1

</llo_original>
